<compile_context>
chip_gen: v6e
topology: v6e:2x2x1
jax: 0.10.0
libtpu: 0.0.40
codegen_flags: <defaults>
</compile_context>

<pallas_src>
import functools

import jax
import jax.numpy as jnp
from jax import lax
from jax.experimental import pallas as pl
from jax.experimental.pallas import tpu as pltpu


# ---------------------------------------------------------------------------
# Kernels
# ---------------------------------------------------------------------------

def _gdl_dense_kernel(x_ref, t_ref, out_ref):
    """Pixel-dense layout; tiling is non-ragged by construction.

    x_ref   : (1, C, S_blk, 128) logits (pixels dense on sublanes+lanes)
    t_ref   : (1, 1, S_blk, 128) int32 class ids
    out_ref : (1, 1, C, 3) f32 accumulator, VMEM-resident across the
              pixel-block axis: [:, 0]=sum targets, [:, 1]=sum t*p, [:, 2]=sum p
    """
    C = x_ref.shape[1]
    s_blk = x_ref.shape[2]
    j = pl.program_id(2)

    @pl.when(j == 0)
    def _init():
        out_ref[...] = jnp.zeros_like(out_ref)

    x = x_ref[0].astype(jnp.float32)               # (C, S_blk, 128)
    t = t_ref[0]                                   # (1, S_blk, 128) int32

    # Softmax over the channel axis: elementwise across C dense pixel planes.
    m = jnp.max(x, axis=0, keepdims=True)          # (1, S_blk, 128)
    e = jnp.exp(x - m)                             # (C, S_blk, 128)
    s = jnp.sum(e, axis=0, keepdims=True)          # (1, S_blk, 128)
    p = e * pl.reciprocal(s, approx=True)          # (C, S_blk, 128)

    # One-hot targets without materializing HW*C ints in HBM.
    cls = lax.broadcasted_iota(jnp.int32, (C, s_blk, 128), 0)
    onehot = (cls == t).astype(jnp.float32)        # (C, S_blk, 128)

    # Per-class partial sums: sublane-sum first, then one lane reduce per class.
    st = jnp.sum(jnp.sum(onehot, axis=1), axis=-1, keepdims=True)        # (C,1)
    stp = jnp.sum(jnp.sum(onehot * p, axis=1), axis=-1, keepdims=True)   # (C,1)
    sp = jnp.sum(jnp.sum(p, axis=1), axis=-1, keepdims=True)             # (C,1)

    out_ref[0, 0, :, 0:1] += st
    out_ref[0, 0, :, 1:2] += stp
    out_ref[0, 0, :, 2:3] += sp


def _gdl_sublane_kernel(x_ref, t_ref, out_ref, *, num_pixels, ragged):
    """Fallback (C, tile) sublane layout for H*W not divisible by 128.

    x_ref   : (1, C, tile) logits, t_ref: (1, 1, tile) int32 class ids
    out_ref : (1, 1, C, 3) f32 accumulator (resident across the tile axis)
    """
    C = x_ref.shape[1]
    tile = x_ref.shape[2]
    j = pl.program_id(1)

    @pl.when(j == 0)
    def _init():
        out_ref[...] = jnp.zeros_like(out_ref)

    x = x_ref[0].astype(jnp.float32)               # (C, tile)
    t = t_ref[0]                                   # (1, tile) int32

    if ragged:
        col = lax.broadcasted_iota(jnp.int32, (1, tile), 1) + j * tile
        valid_b = col < num_pixels                 # (1, tile)
        valid = valid_b.astype(jnp.float32)
        x = jnp.where(valid_b, x, 0.0)             # no NaN/Inf from OOB garbage

    m = jnp.max(x, axis=0, keepdims=True)          # (1, tile)
    e = jnp.exp(x - m)
    s = jnp.sum(e, axis=0, keepdims=True)
    p = e * pl.reciprocal(s, approx=True)          # (C, tile)

    cls = lax.broadcasted_iota(jnp.int32, (C, tile), 0)
    onehot = (cls == t).astype(jnp.float32)

    if ragged:
        onehot = onehot * valid
        p = p * valid

    st = jnp.sum(onehot, axis=1, keepdims=True)          # (C, 1)
    stp = jnp.sum(onehot * p, axis=1, keepdims=True)     # (C, 1)
    sp = jnp.sum(p, axis=1, keepdims=True)               # (C, 1)

    out_ref[0, 0, :, 0:1] += st
    out_ref[0, 0, :, 1:2] += stp
    out_ref[0, 0, :, 2:3] += sp


# ---------------------------------------------------------------------------
# Wrapper
# ---------------------------------------------------------------------------

def _vmem_budget_bytes():
    """Per-generation VMEM budget for the double-buffered streaming blocks."""
    try:
        cap = int(pltpu.get_tpu_info().vmem_capacity_bytes)
    except Exception:
        cap = 64 * 1024 * 1024                    # conservative (v7x per-core)
    budget = min(48 * 1024 * 1024, (cap * 3) // 5)
    return budget, cap


def _pick_dense_block_rows(S, s_target):
    """Non-ragged (multiple-of-8) row-block for the dense layout, or None."""
    if S <= s_target:
        return S                                  # full extent (always legal)
    d = (s_target // 8) * 8
    lo = max(8, ((s_target // 2) // 8) * 8)
    while d >= lo:
        if S % d == 0:
            return d
        d -= 8
    return None


def generalized_dice_loss(inputs, targets, *, eps=1e-9,
                          target_block_bytes=4 * 1024 * 1024):
    """inputs: (N, C, H, W) float logits; targets: (N, H, W) integer labels."""
    N, C, H, W = inputs.shape
    HW = H * W
    itemsize = jnp.dtype(inputs.dtype).itemsize
    t_itemsize = 4                                 # targets streamed as int32

    vmem_budget, vmem_cap = _vmem_budget_bytes()

    x = inputs.reshape(N, C, HW)                   # free (contiguous) reshape
    t = targets.reshape(N, 1, HW).astype(jnp.int32)  # tiny relative to logits

    s_blk = None
    S = 0
    if HW % 128 == 0:
        S = HW // 128
        row_bytes = 128 * (C * itemsize + t_itemsize)
        s_target = max(8, min(target_block_bytes // (128 * C * itemsize),
                              vmem_budget // (2 * row_bytes)))
        s_blk = _pick_dense_block_rows(S, s_target)

    if s_blk is not None:
        # ----- pixel-dense layout: (N, C, S, 128) -----
        num_blocks = S // s_blk
        # Keep a parallel axis of extent >= 2 alive for the v7x megacore.
        G = 2 if (N == 1 and num_blocks >= 2 and num_blocks % 2 == 0) else 1
        T = num_blocks // G

        xd = x.reshape(N, C, S, 128)
        td = t.reshape(N, 1, S, 128)

        usage = 2 * (C * s_blk * 128 * itemsize + s_blk * 128 * t_itemsize)
        vmem_limit = int(min((vmem_cap * 3) // 4,
                             max(32 * 1024 * 1024, 2 * usage + (4 << 20))))

        partials = pl.pallas_call(
            _gdl_dense_kernel,
            out_shape=jax.ShapeDtypeStruct((N, G, C, 3), jnp.float32),
            grid_spec=pltpu.PrefetchScalarGridSpec(
                num_scalar_prefetch=0,
                grid=(N, G, T),
                in_specs=[
                    pl.BlockSpec((1, C, s_blk, 128),
                                 lambda n, g, j: (n, 0, g * T + j, 0)),
                    pl.BlockSpec((1, 1, s_blk, 128),
                                 lambda n, g, j: (n, 0, g * T + j, 0)),
                ],
                out_specs=pl.BlockSpec((1, 1, C, 3),
                                       lambda n, g, j: (n, g, 0, 0)),
            ),
            compiler_params=pltpu.CompilerParams(
                dimension_semantics=("parallel", "parallel", "arbitrary"),
                vmem_limit_bytes=vmem_limit),
        )(xd, td)
    else:
        # ----- fallback: (C, tile) sublane layout with lane masking -----
        px_cap = vmem_budget // (2 * (C * itemsize + t_itemsize))
        px_target = max(128, min(target_block_bytes // (C * itemsize), px_cap))
        if HW <= px_target:
            tile, ragged = HW, False
        else:
            tile = max(128, (px_target // 128) * 128)
            ragged = (HW % tile) != 0
        num_t = pl.cdiv(HW, tile)

        usage = 2 * (C * tile * itemsize + tile * t_itemsize)
        vmem_limit = int(min((vmem_cap * 3) // 4,
                             max(32 * 1024 * 1024, 2 * usage + (4 << 20))))

        kernel = functools.partial(_gdl_sublane_kernel,
                                   num_pixels=HW, ragged=ragged)
        partials = pl.pallas_call(
            kernel,
            out_shape=jax.ShapeDtypeStruct((N, 1, C, 3), jnp.float32),
            grid_spec=pltpu.PrefetchScalarGridSpec(
                num_scalar_prefetch=0,
                grid=(N, num_t),
                in_specs=[
                    pl.BlockSpec((1, C, tile), lambda n, j: (n, 0, j)),
                    pl.BlockSpec((1, 1, tile), lambda n, j: (n, 0, j)),
                ],
                out_specs=pl.BlockSpec((1, 1, C, 3),
                                       lambda n, j: (n, 0, 0, 0)),
            ),
            compiler_params=pltpu.CompilerParams(
                dimension_semantics=("parallel", "arbitrary"),
                vmem_limit_bytes=vmem_limit),
        )(x, t)

    # Tiny O(C) epilogue in plain JAX: generalized-dice weighted reduction.
    sums = jnp.sum(partials, axis=(0, 1))                # (C, 3)
    st, stp, sp = sums[:, 0], sums[:, 1], sums[:, 2]
    w = 1.0 / (st * st + eps)
    numerator = jnp.sum(w * stp)
    denominator = jnp.sum(w * (st + sp))
    dice = 2.0 * (numerator + eps) / (denominator + eps)
    return 1.0 - dice


# ---------------------------------------------------------------------------
# Pure-JAX reference (mirrors the PyTorch forward exactly)
# ---------------------------------------------------------------------------

def _reference(inputs, targets):
    C = inputs.shape[1]
    onehot = jax.nn.one_hot(targets.astype(jnp.int32), C, dtype=jnp.float32)
    probs = jax.nn.softmax(inputs.astype(jnp.float32), axis=1)
    probs = jnp.transpose(probs, (0, 2, 3, 1))           # (N, H, W, C)
    w = 1.0 / (jnp.sum(onehot, axis=(0, 1, 2)) ** 2 + 1e-9)
    numerator = jnp.sum(w * jnp.sum(onehot * probs, axis=(0, 1, 2)))
    denominator = jnp.sum(w * jnp.sum(onehot + probs, axis=(0, 1, 2)))
    dice = 2.0 * (numerator + 1e-9) / (denominator + 1e-9)
    return 1.0 - dice


if __name__ == "__main__":
    key = jax.random.PRNGKey(0)
    k1, k2, k3, k4 = jax.random.split(key, 4)

    # Primary small example implied by the module: NCHW logits + integer labels.
    N, C, H, W = 2, 4, 16, 16
    inputs = jax.random.normal(k1, (N, C, H, W), dtype=jnp.float32)
    targets = jax.random.randint(k2, (N, H, W), 0, C, dtype=jnp.int32)

    loss = jax.block_until_ready(generalized_dice_loss(inputs, targets))
    ref = _reference(inputs, targets)
    # approx=True reciprocal in the softmax denominator -> slightly loose tol.
    assert jnp.allclose(loss, ref, atol=1e-3, rtol=1e-3), (loss, ref)

    # Also exercise the non-128-divisible fallback path (sublane layout).
    inputs2 = jax.random.normal(k3, (1, 3, 17, 17), dtype=jnp.float32)
    targets2 = jax.random.randint(k4, (1, 17, 17), 0, 3, dtype=jnp.int32)
    loss2 = jax.block_until_ready(generalized_dice_loss(inputs2, targets2))
    ref2 = _reference(inputs2, targets2)
    assert jnp.allclose(loss2, ref2, atol=1e-3, rtol=1e-3), (loss2, ref2)

    print("KERNEL_OK")
</pallas_src>

<mosaic_0001>
module attributes {stable_mosaic.version = 11 : i64} {
  func.func @_gdl_dense_kernel(%arg0: i32, %arg1: i32, %arg2: i32, %arg3: memref<1x4x2x128xf32, #tpu.memory_space<vmem>>, %arg4: memref<1x1x2x128xi32, #tpu.memory_space<vmem>>, %arg5: memref<1x1x4x3xf32, #tpu.memory_space<vmem>>) attributes {dimension_semantics = [#tpu.dimension_semantics<parallel>, #tpu.dimension_semantics<parallel>, #tpu.dimension_semantics<arbitrary>], iteration_bounds = array<i64: 2, 1, 1>, scalar_prefetch = 0 : i64, scratch_operands = 0 : i64, tpu.core_type = #tpu.core_type<tc>, window_params = [{transform_indices = @transform_0, window_bounds = array<i64: 1, 4, 2, 128>}, {transform_indices = @transform_1, window_bounds = array<i64: 1, 1, 2, 128>}, {transform_indices = @transform_2, window_bounds = array<i64: 1, 1, 4, 3>}]} {
    %c0_i32 = arith.constant 0 : i32
    %0 = arith.cmpi eq, %arg2, %c0_i32 : i32
    %1 = arith.extui %0 : i1 to i32
    %c0_i32_0 = arith.constant 0 : i32
    %2 = arith.cmpi ne, %1, %c0_i32_0 : i32
    scf.if %2 {
      %cst_37 = arith.constant 0.000000e+00 : f32
      %50 = vector.broadcast %cst_37 : f32 to vector<1x1x4x3xf32>
      %c0_38 = arith.constant 0 : index
      %c0_39 = arith.constant 0 : index
      %c0_40 = arith.constant 0 : index
      %c0_41 = arith.constant 0 : index
      %51 = vector.load %arg5[%c0_38, %c0_39, %c0_40, %c0_41] : memref<1x1x4x3xf32, #tpu.memory_space<vmem>>, vector<1x1x4x3xf32>
      tpu.vector_store %arg5[%c0_38, %c0_39, %c0_40, %c0_41], %50 {strides = array<i32>} : memref<1x1x4x3xf32, #tpu.memory_space<vmem>>, vector<1x1x4x3xf32>,
    } else {
    }
    %c0 = arith.constant 0 : index
    %c0_1 = arith.constant 0 : index
    %c0_2 = arith.constant 0 : index
    %c0_3 = arith.constant 0 : index
    %3 = vector.load %arg3[%c0, %c0_1, %c0_2, %c0_3] : memref<1x4x2x128xf32, #tpu.memory_space<vmem>>, vector<1x4x2x128xf32>
    %4 = vector.shape_cast %3 : vector<1x4x2x128xf32> to vector<4x2x128xf32>
    %c0_4 = arith.constant 0 : index
    %c0_5 = arith.constant 0 : index
    %c0_6 = arith.constant 0 : index
    %c0_7 = arith.constant 0 : index
    %5 = vector.load %arg4[%c0_4, %c0_5, %c0_6, %c0_7] : memref<1x1x2x128xi32, #tpu.memory_space<vmem>>, vector<1x1x2x128xi32>
    %6 = vector.shape_cast %5 : vector<1x1x2x128xi32> to vector<1x2x128xi32>
    %cst = arith.constant dense<0xFF800000> : vector<2x128xf32>
    %7 = vector.multi_reduction <maximumf>, %4, %cst [0] : vector<4x2x128xf32> to vector<2x128xf32>
    %8 = vector.shape_cast %7 : vector<2x128xf32> to vector<1x2x128xf32>
    %9 = vector.broadcast %8 : vector<1x2x128xf32> to vector<4x2x128xf32>
    %10 = arith.subf %4, %9 : vector<4x2x128xf32>
    %11 = math.exp %10 : vector<4x2x128xf32>
    %cst_8 = arith.constant dense<0.000000e+00> : vector<2x128xf32>
    %12 = vector.multi_reduction <add>, %11, %cst_8 [0] : vector<4x2x128xf32> to vector<2x128xf32>
    %13 = vector.shape_cast %12 : vector<2x128xf32> to vector<1x2x128xf32>
    %14 = tpu.reciprocal %13 {approx = true} : vector<1x2x128xf32> -> vector<1x2x128xf32>
    %15 = vector.broadcast %14 : vector<1x2x128xf32> to vector<4x2x128xf32>
    %16 = arith.mulf %11, %15 : vector<4x2x128xf32>
    %17 = tpu.iota {dimensions = array<i32: 0>} : vector<4x2x128xi32>
    %18 = vector.broadcast %6 : vector<1x2x128xi32> to vector<4x2x128xi32>
    %19 = arith.cmpi eq, %17, %18 : vector<4x2x128xi32>
    %20 = arith.extui %19 : vector<4x2x128xi1> to vector<4x2x128xi32>
    %21 = arith.sitofp %20 : vector<4x2x128xi32> to vector<4x2x128xf32>
    %cst_9 = arith.constant dense<0.000000e+00> : vector<4x128xf32>
    %22 = vector.multi_reduction <add>, %21, %cst_9 [1] : vector<4x2x128xf32> to vector<4x128xf32>
    %cst_10 = arith.constant dense<0.000000e+00> : vector<4xf32>
    %23 = vector.multi_reduction <add>, %22, %cst_10 [1] : vector<4x128xf32> to vector<4xf32>
    %24 = vector.shape_cast %23 : vector<4xf32> to vector<4x1xf32>
    %25 = arith.mulf %21, %16 : vector<4x2x128xf32>
    %cst_11 = arith.constant dense<0.000000e+00> : vector<4x128xf32>
    %26 = vector.multi_reduction <add>, %25, %cst_11 [1] : vector<4x2x128xf32> to vector<4x128xf32>
    %cst_12 = arith.constant dense<0.000000e+00> : vector<4xf32>
    %27 = vector.multi_reduction <add>, %26, %cst_12 [1] : vector<4x128xf32> to vector<4xf32>
    %28 = vector.shape_cast %27 : vector<4xf32> to vector<4x1xf32>
    %cst_13 = arith.constant dense<0.000000e+00> : vector<4x128xf32>
    %29 = vector.multi_reduction <add>, %16, %cst_13 [1] : vector<4x2x128xf32> to vector<4x128xf32>
    %cst_14 = arith.constant dense<0.000000e+00> : vector<4xf32>
    %30 = vector.multi_reduction <add>, %29, %cst_14 [1] : vector<4x128xf32> to vector<4xf32>
    %31 = vector.shape_cast %30 : vector<4xf32> to vector<4x1xf32>
    %c0_15 = arith.constant 0 : index
    %c0_16 = arith.constant 0 : index
    %c0_17 = arith.constant 0 : index
    %c0_18 = arith.constant 0 : index
    %32 = vector.load %arg5[%c0_15, %c0_16, %c0_17, %c0_18] : memref<1x1x4x3xf32, #tpu.memory_space<vmem>>, vector<1x1x4x1xf32>
    %33 = vector.shape_cast %32 : vector<1x1x4x1xf32> to vector<4x1xf32>
    %34 = arith.addf %33, %24 : vector<4x1xf32>
    %c0_19 = arith.constant 0 : index
    %c0_20 = arith.constant 0 : index
    %c0_21 = arith.constant 0 : index
    %c0_22 = arith.constant 0 : index
    %35 = vector.load %arg5[%c0_19, %c0_20, %c0_21, %c0_22] : memref<1x1x4x3xf32, #tpu.memory_space<vmem>>, vector<1x1x4x1xf32>
    %36 = vector.shape_cast %35 : vector<1x1x4x1xf32> to vector<4x1xf32>
    %37 = vector.shape_cast %34 : vector<4x1xf32> to vector<1x1x4x1xf32>
    tpu.vector_store %arg5[%c0_19, %c0_20, %c0_21, %c0_22], %37 {strides = array<i32>} : memref<1x1x4x3xf32, #tpu.memory_space<vmem>>, vector<1x1x4x1xf32>,
    %c0_23 = arith.constant 0 : index
    %c0_24 = arith.constant 0 : index
    %c0_25 = arith.constant 0 : index
    %c1 = arith.constant 1 : index
    %38 = vector.load %arg5[%c0_23, %c0_24, %c0_25, %c1] : memref<1x1x4x3xf32, #tpu.memory_space<vmem>>, vector<1x1x4x1xf32>
    %39 = vector.shape_cast %38 : vector<1x1x4x1xf32> to vector<4x1xf32>
    %40 = arith.addf %39, %28 : vector<4x1xf32>
    %c0_26 = arith.constant 0 : index
    %c0_27 = arith.constant 0 : index
    %c0_28 = arith.constant 0 : index
    %c1_29 = arith.constant 1 : index
    %41 = vector.load %arg5[%c0_26, %c0_27, %c0_28, %c1_29] : memref<1x1x4x3xf32, #tpu.memory_space<vmem>>, vector<1x1x4x1xf32>
    %42 = vector.shape_cast %41 : vector<1x1x4x1xf32> to vector<4x1xf32>
    %43 = vector.shape_cast %40 : vector<4x1xf32> to vector<1x1x4x1xf32>
    tpu.vector_store %arg5[%c0_26, %c0_27, %c0_28, %c1_29], %43 {strides = array<i32>} : memref<1x1x4x3xf32, #tpu.memory_space<vmem>>, vector<1x1x4x1xf32>,
    %c0_30 = arith.constant 0 : index
    %c0_31 = arith.constant 0 : index
    %c0_32 = arith.constant 0 : index
    %c2 = arith.constant 2 : index
    %44 = vector.load %arg5[%c0_30, %c0_31, %c0_32, %c2] : memref<1x1x4x3xf32, #tpu.memory_space<vmem>>, vector<1x1x4x1xf32>
    %45 = vector.shape_cast %44 : vector<1x1x4x1xf32> to vector<4x1xf32>
    %46 = arith.addf %45, %31 : vector<4x1xf32>
    %c0_33 = arith.constant 0 : index
    %c0_34 = arith.constant 0 : index
    %c0_35 = arith.constant 0 : index
    %c2_36 = arith.constant 2 : index
    %47 = vector.load %arg5[%c0_33, %c0_34, %c0_35, %c2_36] : memref<1x1x4x3xf32, #tpu.memory_space<vmem>>, vector<1x1x4x1xf32>
    %48 = vector.shape_cast %47 : vector<1x1x4x1xf32> to vector<4x1xf32>
    %49 = vector.shape_cast %46 : vector<4x1xf32> to vector<1x1x4x1xf32>
    tpu.vector_store %arg5[%c0_33, %c0_34, %c0_35, %c2_36], %49 {strides = array<i32>} : memref<1x1x4x3xf32, #tpu.memory_space<vmem>>, vector<1x1x4x1xf32>,
    return
  }
  func.func @transform_0(%arg0: i32, %arg1: i32, %arg2: i32) -> (i32, i32, i32, i32) {
    %c1_i32 = arith.constant 1 : i32
    %0 = arith.muli %arg1, %c1_i32 : i32
    %1 = arith.addi %0, %arg2 : i32
    %c0_i32 = arith.constant 0 : i32
    %c0_i32_0 = arith.constant 0 : i32
    %c0_i32_1 = arith.constant 0 : i32
    return %arg0, %c0_i32, %1, %c0_i32_0 : i32, i32, i32, i32
  }
  func.func @transform_1(%arg0: i32, %arg1: i32, %arg2: i32) -> (i32, i32, i32, i32) {
    %c1_i32 = arith.constant 1 : i32
    %0 = arith.muli %arg1, %c1_i32 : i32
    %1 = arith.addi %0, %arg2 : i32
    %c0_i32 = arith.constant 0 : i32
    %c0_i32_0 = arith.constant 0 : i32
    %c0_i32_1 = arith.constant 0 : i32
    return %arg0, %c0_i32, %1, %c0_i32_0 : i32, i32, i32, i32
  }
  func.func @transform_2(%arg0: i32, %arg1: i32, %arg2: i32) -> (i32, i32, i32, i32) {
    %c0_i32 = arith.constant 0 : i32
    %c0_i32_0 = arith.constant 0 : i32
    %c0_i32_1 = arith.constant 0 : i32
    return %arg0, %arg1, %c0_i32, %c0_i32_0 : i32, i32, i32, i32
  }
}

</mosaic_0001>

<llo_original>
// kernel: tpu_custom_call.1
$region0: #{tpu_custom_call.1}
  #allocation0 [shape = 'u32[]', space=smem, size = 0x4, offset = 0x4, fixed_abs, tag = 'smem constant byte address 0x4 - core index']
  #allocation1 [shape = 'u32[144,128]{1,0:T(1,128)}', space=vmem, size = 0x12000, scoped, tag = 'internal scratch']
  %s0 = inlined_call_operand.hbm [shape: f32[2,4,2,128], index: 0, kind: input, shape index: {}]
  %s1 = inlined_call_operand.hbm [shape: s32[2,1,2,128], index: 1, kind: input, shape index: {}]
  %s2 = inlined_call_operand.vmem [shape: f32[2,1,4,3], index: 2, kind: output, shape index: {}]
  %s3 = sld [smem:[#allocation0]]
  $region53: #{tpu_custom_call.1} parent=0
    _
  %s5 = ssub.s32 1, %s3
  %s6 = scalar_select 0, %s5, %s3
  $region1: #{tpu_custom_call.1} parent=0
    #allocation2 [shape = 'u8[8192]{0}', space=vmem, size = 0x2000, scoped, tag = 'input window, operand 0']
    #allocation3 [shape = 's32[2]{0}', space=sflag, size = 0x8, scoped, tag = 'scoped memory for tpu_custom_call.1']
    #allocation4 [shape = 'u8[2048]{0}', space=vmem, size = 0x800, scoped, tag = 'input window, operand 1']
    #allocation5 [shape = 's32[2]{0}', space=sflag, size = 0x8, scoped, tag = 'scoped memory for tpu_custom_call.1']
    %7 = vsyncpa [#allocation3], 0
    %s8 = scalar_lea.sflag [#allocation3], 1
    %9 = vsyncpa %s8, 0
    %10 = vsyncpa [#allocation5], 0
    %s11 = scalar_lea.sflag [#allocation5], 1
    %12 = vsyncpa %s11, 0
    loop: start=0, step=1, limit=4
    $region2: #{tpu_custom_call.1} parent=1 // loop_pre_header
      _
    $region3: #{tpu_custom_call.1} parent=1 // loop_header
      %s14 = sphi 0, %s18
      %p15 = scmp.ge.s32.totalorder %s14, 4
      %s21 = sphi 0, %s40
      %s22 = sphi 0, %s36
      %s23 = sphi 0, %s32
      %s24 = sphi 0, %s21
      %s25 = sphi 0, %s22
      %s26 = sphi 0, %s23
      %s27 = sphi 0, %s24
      %s28 = sphi 0, %s25
      %s29 = sphi 0, %s26
      %s47 = sphi 0, %s49
      %s50 = sphi 0, %s47
      %s51 = sphi 0, %s50
      %s67 = sphi 0, %s51
      %s77 = sphi 0, %s79
      %s80 = sphi 0, %s77
      %s81 = sphi 0, %s80
      %s97 = sphi 0, %s81
      %s105 = sphi 0, %s107
      %s108 = sphi 0, %s105
      %s109 = sphi 0, %s108
      %s125 = sphi 0, %s109
    $region4: #{tpu_custom_call.1} parent=1 // loop_header_branch
      %17 = sbr.rel (%p15) target = $region8
    $region5: #{tpu_custom_call.1} parent=1 // loop_body
      %s19 = ssub.s32 %s14, 1
      %s20 = ssub.s32 %s14, 2
      %s30 = sadd.s32 1, %s23
      %p31 = scmp.ge.s32.totalorder %s30, 1
      %s32 = scalar_select %p31, 0, %s30
      %s33 = sadd.s32 1, %s22
      %s34 = scalar_select %p31, %s33, %s22
      %p35 = scmp.ge.s32.totalorder %s34, 1
      %s36 = scalar_select %p35, 0, %s34
      %s37 = sadd.s32 1, %s21
      %s38 = scalar_select %p35, %s37, %s21
      %p39 = scmp.ge.s32.totalorder %s38, 2
      %s40 = scalar_select %p39, 0, %s38
      %s41 = sadd.s32 %s22, %s23
      %s42 = sadd.s32 %s36, %s32
      %s43 = ssub.s32 %s21, %s40
      %s44 = ssub.s32 %s41, %s42
      %s45 = sor.u32 %s43, %s44
      %p46 = scmp.eq.s32.totalorder %s45, 0
      %s48 = sadd.s32 %s47, 1
      %s49 = scalar_select %p46, %s47, %s48
      %p52 = pneg %p46
      %p53 = scmp.eq.s32.totalorder %s14, 1
      %p54 = por %p52, %p53
      %p55 = scmp.ne.s32.totalorder %s47, %s50
      %p56 = scmp.eq.s32.totalorder %s14, 0
      %p57 = por %p55, %p56
      %p58 = scmp.ne.s32.totalorder %s47, %s50
      %p59 = scmp.eq.s32.totalorder %s19, 1
      %p60 = por %p58, %p59
      %p61 = scmp.ne.s32.totalorder %s50, %s51
      %p62 = scmp.eq.s32.totalorder %s19, 0
      %p63 = por %p61, %p62
      %p64 = scmp.ne.s32.totalorder %s50, %s51
      %p65 = scmp.eq.s32.totalorder %s20, 1
      %p66 = por %p64, %p65
      %p68 = scmp.ne.s32.totalorder %s51, %s67
      %p69 = scmp.eq.s32.totalorder %s20, 0
      %p70 = por %p68, %p69
      %s71 = sadd.s32 %s22, %s23
      %s72 = sadd.s32 %s36, %s32
      %s73 = ssub.s32 %s21, %s40
      %s74 = ssub.s32 %s71, %s72
      %s75 = sor.u32 %s73, %s74
      %p76 = scmp.eq.s32.totalorder %s75, 0
      %s78 = sadd.s32 %s77, 1
      %s79 = scalar_select %p76, %s77, %s78
      %p82 = pneg %p76
      %p83 = scmp.eq.s32.totalorder %s14, 1
      %p84 = por %p82, %p83
      %p85 = scmp.ne.s32.totalorder %s77, %s80
      %p86 = scmp.eq.s32.totalorder %s14, 0
      %p87 = por %p85, %p86
      %p88 = scmp.ne.s32.totalorder %s77, %s80
      %p89 = scmp.eq.s32.totalorder %s19, 1
      %p90 = por %p88, %p89
      %p91 = scmp.ne.s32.totalorder %s80, %s81
      %p92 = scmp.eq.s32.totalorder %s19, 0
      %p93 = por %p91, %p92
      %p94 = scmp.ne.s32.totalorder %s80, %s81
      %p95 = scmp.eq.s32.totalorder %s20, 1
      %p96 = por %p94, %p95
      %p98 = scmp.ne.s32.totalorder %s81, %s97
      %p99 = scmp.eq.s32.totalorder %s20, 0
      %p100 = por %p98, %p99
      %s101 = ssub.s32 %s21, %s40
      %s102 = ssub.s32 %s22, %s36
      %s103 = sor.u32 %s101, %s102
      %p104 = scmp.eq.s32.totalorder %s103, 0
      %s106 = sadd.s32 %s105, 1
      %s107 = scalar_select %p104, %s105, %s106
      %p110 = pneg %p104
      %p111 = scmp.eq.s32.totalorder %s14, 1
      %p112 = por %p110, %p111
      %p113 = scmp.ne.s32.totalorder %s105, %s108
      %p114 = scmp.eq.s32.totalorder %s14, 0
      %p115 = por %p113, %p114
      %p116 = scmp.ne.s32.totalorder %s105, %s108
      %p117 = scmp.eq.s32.totalorder %s19, 1
      %p118 = por %p116, %p117
      %p119 = scmp.ne.s32.totalorder %s108, %s109
      %p120 = scmp.eq.s32.totalorder %s19, 0
      %p121 = por %p119, %p120
      %p122 = scmp.ne.s32.totalorder %s108, %s109
      %p123 = scmp.eq.s32.totalorder %s20, 1
      %p124 = por %p122, %p123
      %p126 = scmp.ne.s32.totalorder %s109, %s125
      %p127 = scmp.eq.s32.totalorder %s20, 0
      %p128 = por %p126, %p127
      %p129 = scmp.le.s32.totalorder 1, %s14
      %p130 = scmp.lt.s32.totalorder %s14, 3
      %p131 = pnand %p129, %p130
      %p132 = pneg %p131
      // Predicated region
      $region9: #{tpu_custom_call.1} parent=5 // pred_check
        _
      $region10: #{tpu_custom_call.1} parent=5 // pred_check_branch
        %134 = sbr.rel (%p131) target = $region12
      $region11: #{tpu_custom_call.1} parent=5 // pred_region
        %s135 = ssub.s32 %s14, 1
      $region12: #{tpu_custom_call.1} parent=5 // pred_fallthru
        _
      %p136 = scmp.lt.s32.totalorder %s14, 2
      // Predicated region
      $region13: #{tpu_custom_call.1} parent=5 // pred_check
        %p137 = pneg %p136
      $region14: #{tpu_custom_call.1} parent=5 // pred_check_branch
        %139 = sbr.rel (%p137) target = $region16
      $region15: #{tpu_custom_call.1} parent=5 // pred_region
        // Predicated region
        $region17: #{tpu_custom_call.1} parent=15 // pred_check
          %p140 = pneg %p57
        $region18: #{tpu_custom_call.1} parent=15 // pred_check_branch
          %142 = sbr.rel (%p140) target = $region20
        $region19: #{tpu_custom_call.1} parent=15 // pred_region
          %s143 = sand.u32 %s47, 1
          %s144 = scalar_lea.sflag [#allocation3], %s143
          %s145 = sand.u32 %s47, 1
          %s146 = smul.addr %s145, 8
          %s147 = scalar_lea.vmem [#allocation2], %s146
          %s148 = sadd.s32 %s22, %s23
          %s150 = ssub.s32 128, 128
          %151 = vsyncadd %s144, %s150
          %s152 = smul.addr %s21, 4
          %s153 = sadd.s32 %s148, %s152
          %s154 = smul.addr %s153, 32
          %s155 = scalar_lea.hbm %s0, %s154
          %s156 = sshll.u32 %s147, 4
          %s157 = int_to_ptr.vmem [resolvable:$true] %s156
          %162 = dma.hbm_to_vmem [thread:$0]  %s155, 128, %s157, %s144, 32, 32, 2
        $region20: #{tpu_custom_call.1} parent=15 // pred_fallthru
          _
        // Predicated region
        $region21: #{tpu_custom_call.1} parent=15 // pred_check
          %p163 = pneg %p87
        $region22: #{tpu_custom_call.1} parent=15 // pred_check_branch
          %165 = sbr.rel (%p163) target = $region24
        $region23: #{tpu_custom_call.1} parent=15 // pred_region
          %s166 = sand.u32 %s77, 1
          %s167 = scalar_lea.sflag [#allocation5], %s166
          %s168 = sand.u32 %s77, 1
          %s169 = smul.addr %s168, 2
          %s170 = scalar_lea.vmem [#allocation4], %s169
          %s171 = sadd.s32 %s22, %s23
          %s173 = ssub.s32 32, 32
          %174 = vsyncadd %s167, %s173
          %s175 = sadd.s32 %s171, %s21
          %s176 = smul.addr %s175, 32
          %s177 = scalar_lea.hbm %s1, %s176
          %s179 = sshll.u32 %s170, 4
          %s180 = int_to_ptr.vmem [resolvable:$true] %s179
          %182 = dma.hbm_to_vmem [thread:$0]  %s177, 32, %s180, %s167
        $region24: #{tpu_custom_call.1} parent=15 // pred_fallthru
          _
      $region16: #{tpu_custom_call.1} parent=5 // pred_fallthru
        _
      %p183 = scmp.le.s32.totalorder 1, %s14
      %p184 = scmp.lt.s32.totalorder %s14, 3
      %p185 = pnand %p183, %p184
      %p186 = pneg %p185
      // Predicated region
      $region25: #{tpu_custom_call.1} parent=5 // pred_check
        _
      $region26: #{tpu_custom_call.1} parent=5 // pred_check_branch
        %188 = sbr.rel (%p185) target = $region28
      $region27: #{tpu_custom_call.1} parent=5 // pred_region
        %s189 = ssub.s32 %s14, 1
        %s190 = sand.u32 %s50, 1
        %s191 = scalar_lea.sflag [#allocation3], %s190
        %s192 = sand.u32 %s50, 1
        %s193 = smul.addr %s192, 8
        %s194 = scalar_lea.vmem [#allocation2], %s193
        // Predicated region
        $region29: #{tpu_custom_call.1} parent=27 // pred_check
          %p195 = pneg %p63
        $region30: #{tpu_custom_call.1} parent=27 // pred_check_branch
          %197 = sbr.rel (%p195) target = $region32
        $region31: #{tpu_custom_call.1} parent=27 // pred_region
          %198 = dma.done %s191, 128
        $region32: #{tpu_custom_call.1} parent=27 // pred_fallthru
          _
        %s199 = sand.u32 %s80, 1
        %s200 = scalar_lea.sflag [#allocation5], %s199
        %s201 = sand.u32 %s80, 1
        %s202 = smul.addr %s201, 2
        %s203 = scalar_lea.vmem [#allocation4], %s202
        // Predicated region
        $region33: #{tpu_custom_call.1} parent=27 // pred_check
          %p204 = pneg %p93
        $region34: #{tpu_custom_call.1} parent=27 // pred_check_branch
          %206 = sbr.rel (%p204) target = $region36
        $region35: #{tpu_custom_call.1} parent=27 // pred_region
          %207 = dma.done %s200, 32
        $region36: #{tpu_custom_call.1} parent=27 // pred_fallthru
          _
        %s208 = sand.u32 %s50, 1
        %s209 = scalar_lea.sflag [#allocation3], %s208
        %s210 = sand.u32 %s50, 1
        %s211 = smul.addr %s210, 8
        %s212 = scalar_lea.vmem [#allocation2], %s211
        %p213 = pneg %p63
        %p214 = pneg %p60
        %s215 = sand.u32 %s80, 1
        %s216 = scalar_lea.sflag [#allocation5], %s215
        %s217 = sand.u32 %s80, 1
        %s218 = smul.addr %s217, 2
        %s219 = scalar_lea.vmem [#allocation4], %s218
        %p220 = pneg %p93
        %p221 = pneg %p90
        %p222 = pneg %p121
        %p223 = pneg %p118
        %p224 = scmp.lt.s32.totalorder %s24, 1
        %s225 = scalar_select %p224, %s24, 1
        %p226 = scmp.lt.s32.totalorder %s25, 0
        %s227 = scalar_select %p226, %s25, 0
        %s228 = sadd.s32 %s227, %s225
        %s229 = smul.addr %s228, 4
        %s230 = scalar_lea.vmem %s2, %s229
        %s231 = sadd.s32 %s25, %s26
        %s232 = sadd.s32 %s25, %s26
        %p233 = scmp.lt.s32.totalorder %s24, 1
        %s234 = scalar_select %p233, %s24, 1
        %p235 = scmp.lt.s32.totalorder %s25, 0
        %s236 = scalar_select %p235, %s25, 0
        %s237 = sadd.s32 %s236, %s234
        %s238 = smul.addr %s237, 4
        %s239 = scalar_lea.vmem %s2, %s238
        %p240 = scmp.eq.s32.totalorder %s26, 0
        // Predicated region
        $region37: #{tpu_custom_call.1} parent=27 // pred_check
          %p241 = pneg %p240
        $region38: #{tpu_custom_call.1} parent=27 // pred_check_branch
          %243 = sbr.rel (%p241) target = $region40
        $region39: #{tpu_custom_call.1} parent=27 // pred_region
          %vm244 = vcmask 19456
          %245 = vst.msk [vmem:[%s239] sm:$0xf] %vm244, 0.0
        $region40: #{tpu_custom_call.1} parent=27 // pred_fallthru
          _
        %v246 = vld [vmem:[%s194] sm:$0x3]
        %v247 = vld [vmem:[%s194 + $0x2] sm:$0x3]
        %v248 = vld [vmem:[%s194 + $0x4] sm:$0x3]
        %v249 = vld [vmem:[%s194 + $0x6] sm:$0x3]
        %v250 = vld [vmem:[%s203] sm:$0x3]
        %vm251 = vcmask 1041408
        %v252 = vsel %vm251, %v246, -inf
        %v253 = vsel %vm251, %v247, -inf
        %v254 = vsel %vm251, %v248, -inf
        %v255 = vsel %vm251, %v249, -inf
        %v256 = vmax.f32 %v252, %v253
        %v257 = vmax.f32 %v254, %v255
        %v258 = vmax.f32 %v256, %v257
        %v259 = vsub.f32 %v246, %v258
        %v260 = vsub.f32 %v247, %v258
        %v261 = vsub.f32 %v248, %v258
        %v262 = vsub.f32 %v249, %v258
        %v263 = vmul.f32 %v259, 1.442695
        %v264 = vpow.pop %v263
        %v265 = vmul.f32 %v260, 1.442695
        %v266 = vpow.pop %v265
        %v267 = vmul.f32 %v261, 1.442695
        %v268 = vpow.pop %v267
        %v269 = vmul.f32 %v262, 1.442695
        %v270 = vpow.pop %v269
        %v271 = vsel %vm251, %v264, 0.0
        %v272 = vsel %vm251, %v266, 0.0
        %v273 = vadd.f32 %v271, %v272
        %v274 = vsel %vm251, %v268, 0.0
        %v275 = vadd.f32 %v273, %v274
        %v276 = vsel %vm251, %v270, 0.0
        %v277 = vadd.f32 %v275, %v276
        %v278 = vrcp.pop %v277
        %v279 = vmul.f32 %v264, %v278
        %v280 = vmul.f32 %v266, %v278
        %v281 = vmul.f32 %v268, %v278
        %v282 = vmul.f32 %v270, %v278
        %vm283 = vcmp.eq.s32.totalorder %v250, 0
        %vm284 = vcmp.eq.s32.totalorder %v250, 1
        %vm285 = vcmp.eq.s32.totalorder %v250, 2
        %vm286 = vcmp.eq.s32.totalorder %v250, 3
        %v287 = vsel %vm283, 1, 0
        %v288 = vsel %vm284, 1, 0
        %v289 = vsel %vm285, 1, 0
        %v290 = vsel %vm286, 1, 0
        %v291 = vcvt.s32.f32 %v287
        %v292 = vcvt.s32.f32 %v288
        %v293 = vcvt.s32.f32 %v289
        %v294 = vcvt.s32.f32 %v290
        %v295 = vsel %vm251, %v291, 0.0
        %v296 = vrot.slane %v295, 4
        %v297 = vadd.f32 %v295, %v296
        %v298 = vrot.slane %v297, 2
        %v299 = vadd.f32 %v297, %v298
        %v300 = vrot.slane %v299, 1
        %v301 = vadd.f32 %v299, %v300
        %v302 = vsel %vm251, %v292, 0.0
        %v303 = vrot.slane %v302, 4
        %v304 = vadd.f32 %v302, %v303
        %v305 = vrot.slane %v304, 2
        %v306 = vadd.f32 %v304, %v305
        %v307 = vrot.slane %v306, 1
        %v308 = vadd.f32 %v306, %v307
        %v309 = vsel %vm251, %v293, 0.0
        %v310 = vrot.slane %v309, 4
        %v311 = vadd.f32 %v309, %v310
        %v312 = vrot.slane %v311, 2
        %v313 = vadd.f32 %v311, %v312
        %v314 = vrot.slane %v313, 1
        %v315 = vadd.f32 %v313, %v314
        %v316 = vsel %vm251, %v294, 0.0
        %v317 = vrot.slane %v316, 4
        %v318 = vadd.f32 %v316, %v317
        %v319 = vrot.slane %v318, 2
        %v320 = vadd.f32 %v318, %v319
        %v321 = vrot.slane %v320, 1
        %v322 = vadd.f32 %v320, %v321
        %vm327 = vcmask 1041409
        %v328 = vsel %vm327, %v308, %v301
        %vm329 = vcmask 1042434
        %v330 = vsel %vm329, %v315, %v328
        %vm331 = vcmask 1043459
        %v332 = vsel %vm331, %v322, %v330
        %vm334 = vcmask 1043456
        %v335 = vsel %vm334, %v332, 0.0
        %336 = vadd.xlane.f32.xlu0 %v335
        %v337 = vpop.xlane.xlu0 %336
        %v338 = vmul.f32 %v291, %v279
        %v339 = vmul.f32 %v292, %v280
        %v340 = vmul.f32 %v293, %v281
        %v341 = vmul.f32 %v294, %v282
        %v342 = vsel %vm251, %v338, 0.0
        %v343 = vrot.slane %v342, 4
        %v344 = vadd.f32 %v342, %v343
        %v345 = vrot.slane %v344, 2
        %v346 = vadd.f32 %v344, %v345
        %v347 = vrot.slane %v346, 1
        %v348 = vadd.f32 %v346, %v347
        %v349 = vsel %vm251, %v339, 0.0
        %v350 = vrot.slane %v349, 4
        %v351 = vadd.f32 %v349, %v350
        %v352 = vrot.slane %v351, 2
        %v353 = vadd.f32 %v351, %v352
        %v354 = vrot.slane %v353, 1
        %v355 = vadd.f32 %v353, %v354
        %v356 = vsel %vm251, %v340, 0.0
        %v357 = vrot.slane %v356, 4
        %v358 = vadd.f32 %v356, %v357
        %v359 = vrot.slane %v358, 2
        %v360 = vadd.f32 %v358, %v359
        %v361 = vrot.slane %v360, 1
        %v362 = vadd.f32 %v360, %v361
        %v363 = vsel %vm251, %v341, 0.0
        %v364 = vrot.slane %v363, 4
        %v365 = vadd.f32 %v363, %v364
        %v366 = vrot.slane %v365, 2
        %v367 = vadd.f32 %v365, %v366
        %v368 = vrot.slane %v367, 1
        %v369 = vadd.f32 %v367, %v368
        %v374 = vsel %vm327, %v355, %v348
        %v375 = vsel %vm329, %v362, %v374
        %v376 = vsel %vm331, %v369, %v375
        %v378 = vsel %vm334, %v376, 0.0
        %379 = vadd.xlane.f32.xlu0 %v378
        %v380 = vpop.xlane.xlu0 %379
        %v381 = vsel %vm251, %v279, 0.0
        %v382 = vrot.slane %v381, 4
        %v383 = vadd.f32 %v381, %v382
        %v384 = vrot.slane %v383, 2
        %v385 = vadd.f32 %v383, %v384
        %v386 = vrot.slane %v385, 1
        %v387 = vadd.f32 %v385, %v386
        %v388 = vsel %vm251, %v280, 0.0
        %v389 = vrot.slane %v388, 4
        %v390 = vadd.f32 %v388, %v389
        %v391 = vrot.slane %v390, 2
        %v392 = vadd.f32 %v390, %v391
        %v393 = vrot.slane %v392, 1
        %v394 = vadd.f32 %v392, %v393
        %v395 = vsel %vm251, %v281, 0.0
        %v396 = vrot.slane %v395, 4
        %v397 = vadd.f32 %v395, %v396
        %v398 = vrot.slane %v397, 2
        %v399 = vadd.f32 %v397, %v398
        %v400 = vrot.slane %v399, 1
        %v401 = vadd.f32 %v399, %v400
        %v402 = vsel %vm251, %v282, 0.0
        %v403 = vrot.slane %v402, 4
        %v404 = vadd.f32 %v402, %v403
        %v405 = vrot.slane %v404, 2
        %v406 = vadd.f32 %v404, %v405
        %v407 = vrot.slane %v406, 1
        %v408 = vadd.f32 %v406, %v407
        %v413 = vsel %vm327, %v394, %v387
        %v414 = vsel %vm329, %v401, %v413
        %v415 = vsel %vm331, %v408, %v414
        %v417 = vsel %vm334, %v415, 0.0
        %418 = vadd.xlane.f32.xlu0 %v417
        %v419 = vpop.xlane.xlu0 %418
        %v420 = vld [vmem:[%s239] sm:$0xf]
        %v421 = vadd.f32 %v420, %v337
        %vm422 = vcmask 3072
        %423 = vst.msk [vmem:[%s239] sm:$0xf] %vm422, %v421
        %v424 = vld [vmem:[%s239] sm:$0xf]
        %v425 = vadd.f32 %v424, %v380
        %vm426 = vcmask 11272
        %427 = vst.msk [vmem:[%s239] sm:$0xf] %vm426, %v425
        %v428 = vld [vmem:[%s239] sm:$0xf]
        %v429 = vadd.f32 %v428, %v419
        %vm430 = vcmask 19472
        %431 = vst.msk [vmem:[%s239] sm:$0xf] %vm430, %v429
        %p432 = scmp.lt.s32.totalorder %s24, 1
        %s433 = scalar_select %p432, %s24, 1
        %p434 = scmp.lt.s32.totalorder %s25, 0
        %s435 = scalar_select %p434, %s25, 0
        %s436 = sadd.s32 %s435, %s433
        %s437 = smul.addr %s436, 4
        %s438 = scalar_lea.vmem %s2, %s437
        // Predicated region
        $region41: #{tpu_custom_call.1} parent=27 // pred_check
          %p439 = pneg %p118
        $region42: #{tpu_custom_call.1} parent=27 // pred_check_branch
          %441 = sbr.rel (%p439) target = $region44
        $region43: #{tpu_custom_call.1} parent=27 // pred_region
          _
        $region44: #{tpu_custom_call.1} parent=27 // pred_fallthru
          _
      $region28: #{tpu_custom_call.1} parent=5 // pred_fallthru
        _
      %p442 = scmp.le.s32.totalorder 2, %s14
      // Predicated region
      $region45: #{tpu_custom_call.1} parent=5 // pred_check
        %p443 = pneg %p442
      $region46: #{tpu_custom_call.1} parent=5 // pred_check_branch
        %445 = sbr.rel (%p443) target = $region48
      $region47: #{tpu_custom_call.1} parent=5 // pred_region
        %s446 = ssub.s32 %s14, 2
        // Predicated region
        $region49: #{tpu_custom_call.1} parent=47 // pred_check
          %p447 = pneg %p124
        $region50: #{tpu_custom_call.1} parent=47 // pred_check_branch
          %449 = sbr.rel (%p447) target = $region52
        $region51: #{tpu_custom_call.1} parent=47 // pred_region
          %p450 = scmp.lt.s32.totalorder %s27, 1
          %s451 = scalar_select %p450, %s27, 1
          %p452 = scmp.lt.s32.totalorder %s28, 0
          %s453 = scalar_select %p452, %s28, 0
          %s454 = sadd.s32 %s453, %s451
          %s455 = smul.addr %s454, 4
          %s456 = scalar_lea.vmem %s2, %s455
        $region52: #{tpu_custom_call.1} parent=47 // pred_fallthru
          _
      $region48: #{tpu_custom_call.1} parent=5 // pred_fallthru
        _
    $region6: #{tpu_custom_call.1} parent=1 // loop_footer
      %s18 = sadd.s32 1, %s14
    $region7: #{tpu_custom_call.1} parent=1 // loop_footer_branch
      %13 = sbr.rel target = $region3
    $region8: #{tpu_custom_call.1} parent=1 // loop_exit
      _
    %457 = vsyncpa [#allocation3], 1
    %s458 = scalar_lea.sflag [#allocation3], 1
    %459 = vsyncpa %s458, 1
    %460 = vsyncpa [#allocation5], 1
    %s461 = scalar_lea.sflag [#allocation5], 1
    %462 = vsyncpa %s461, 1

</llo_original>
